<compile_context>
chip_gen: v5e
topology: v5e:2x2
jax: 0.10.0
libtpu: 0.0.40
codegen_flags: <defaults>
</compile_context>

<pallas_src>
import jax
import jax.numpy as jnp
from jax.experimental import pallas as pl
from jax.experimental.pallas import tpu as pltpu


def _round_up(x, m):
    return ((x + m - 1) // m) * m


def _default_vmem_limit_bytes():
    """Per-generation scoped VMEM budget: ~75% of physical, capped at 100 MiB."""
    try:
        cap = pltpu.get_tpu_info().vmem_capacity_bytes
        return min(int(cap * 0.75), 100 * 1024 * 1024)
    except Exception:
        # Safe on every generation (v7x physical VMEM per TC = 64 MiB).
        return 48 * 1024 * 1024


def audio_mlp_kernel(x_ref, w1_ref, b1_ref, w2_ref, b2_ref, o_ref):
    # Cast activations to the (bf16) weight dtype inside the kernel -> no
    # separate padded bf16 copy of x in HBM. MXU matmuls with f32 accumulation;
    # bias add + ReLU stay in f32 on the VPU.
    x = x_ref[...].astype(w1_ref.dtype)
    h = jnp.dot(x, w1_ref[...], preferred_element_type=jnp.float32)
    h = jnp.maximum(h + b1_ref[...], 0.0)
    y = jnp.dot(h.astype(w2_ref.dtype), w2_ref[...],
                preferred_element_type=jnp.float32)
    o_ref[...] = (y + b2_ref[...]).astype(o_ref.dtype)


def prepare_params(w1, b1, w2, b2, *, compute_dtype=jnp.bfloat16):
    """Pad the hidden dim to a multiple of 128 and cast weights to bf16 ONCE.

    Call at init time and reuse the result across forward calls (this is the
    hoisted per-call padding the perf review flagged). Biases stay in f32.
    Zero padding keeps the math exact: padded W1 columns / b1 entries are 0,
    so the padded h columns are relu(0)=0 and the padded (zero) W2 rows
    contribute nothing.
    """
    in_dim, hidden = w1.shape
    hid_p = _round_up(hidden, 128)
    cd = compute_dtype
    w1p = jnp.zeros((in_dim, hid_p), cd).at[:, :hidden].set(w1.astype(cd))
    w2p = jnp.zeros((hid_p, hid_p), cd).at[:hidden, :hidden].set(w2.astype(cd))
    b1p = jnp.zeros((1, hid_p), jnp.float32).at[:, :hidden].set(
        jnp.asarray(b1, jnp.float32).reshape(1, hidden))
    b2p = jnp.zeros((1, hid_p), jnp.float32).at[:, :hidden].set(
        jnp.asarray(b2, jnp.float32).reshape(1, hidden))
    return {"w1": w1p, "b1": b1p, "w2": w2p, "b2": b2p,
            "in_dim": in_dim, "hidden": hidden}


def _pick_tile_m(batch, in_dim, hid_p, x_itemsize, out_itemsize,
                 vmem_limit_bytes):
    """Largest batch tile (<=1024, 8-multiple) fitting a conservative budget."""
    # Resident weights budgeted as DOUBLE-buffered (worst case) + f32 biases,
    # so falling back from pl.Buffered(1) never blows the plan.
    weight_bytes = 2 * (2 * (in_dim * hid_p + hid_p * hid_p) + 2 * 4 * hid_p)
    # Per batch-row: double-buffered x tile + double-buffered out tile +
    # f32 intermediate h + bf16 copy of h for the second matmul.
    per_row = 2 * x_itemsize * in_dim + 2 * out_itemsize * hid_p + 6 * hid_p
    budget = int(0.75 * vmem_limit_bytes) - weight_bytes
    cap = budget // per_row if budget > 0 else 8
    cap = max(8, (cap // 8) * 8)
    cap = min(1024, cap)
    if batch <= cap:
        # One grid step covering the whole batch; block == full array dim is
        # legal even when batch is not a multiple of 8, and avoids padding x.
        return max(batch, 1)
    # Large batch: guarantee >= 2 grid steps along the parallel axis so both
    # v7x TensorCores get work.
    half = _round_up((batch + 1) // 2, 8)
    return max(8, min(cap, half))


def audio_mlp(x, params, *, tile_m=None, vmem_limit_bytes=None):
    """x: (B, in_dim) -> (B, hidden) in x.dtype. `params` from prepare_params."""
    B, in_dim = x.shape
    assert in_dim == params["in_dim"], "x feature dim does not match params"
    hidden = params["hidden"]
    w1p, b1p, w2p, b2p = params["w1"], params["b1"], params["w2"], params["b2"]
    hid_p = w1p.shape[1]
    out_dtype = x.dtype
    out_itemsize = jnp.dtype(out_dtype).itemsize

    if vmem_limit_bytes is None:
        vmem_limit_bytes = _default_vmem_limit_bytes()
    if tile_m is None:
        tile_m = _pick_tile_m(B, in_dim, hid_p, x.dtype.itemsize,
                              out_itemsize, vmem_limit_bytes)

    # Only the batch dim is ever padded (cheap); the feature dim of x rides
    # through unpadded as a full-array block.
    B_p = _round_up(B, tile_m)
    xp = x if B_p == B else jnp.zeros((B_p, in_dim), x.dtype).at[:B].set(x)

    grid = (B_p // tile_m,)
    flops = 2 * B_p * (in_dim * hid_p + hid_p * hid_p)
    bytes_accessed = (B_p * in_dim * x.dtype.itemsize
                      + (w1p.size + w2p.size) * w1p.dtype.itemsize
                      + (b1p.size + b2p.size) * 4
                      + B_p * hid_p * out_itemsize)

    def call(weight_mode):
        # Weights / biases have a constant block index -> resident across the
        # grid; weight_mode=Buffered(1) halves their VMEM footprint.
        w_specs = [
            pl.BlockSpec((in_dim, hid_p), lambda i: (0, 0),
                         pipeline_mode=weight_mode),
            pl.BlockSpec((1, hid_p), lambda i: (0, 0),
                         pipeline_mode=weight_mode),
            pl.BlockSpec((hid_p, hid_p), lambda i: (0, 0),
                         pipeline_mode=weight_mode),
            pl.BlockSpec((1, hid_p), lambda i: (0, 0),
                         pipeline_mode=weight_mode),
        ]
        return pl.pallas_call(
            audio_mlp_kernel,
            out_shape=jax.ShapeDtypeStruct((B_p, hid_p), out_dtype),
            grid_spec=pltpu.PrefetchScalarGridSpec(
                num_scalar_prefetch=0,
                grid=grid,
                in_specs=[pl.BlockSpec((tile_m, in_dim), lambda i: (i, 0))]
                         + w_specs,
                out_specs=pl.BlockSpec((tile_m, hid_p), lambda i: (i, 0)),
            ),
            compiler_params=pltpu.CompilerParams(
                dimension_semantics=("parallel",),
                vmem_limit_bytes=vmem_limit_bytes,
            ),
            cost_estimate=pl.CostEstimate(flops=flops, transcendentals=0,
                                          bytes_accessed=bytes_accessed),
        )(xp, w1p, b1p, w2p, b2p)

    try:
        out = call(pl.Buffered(1))
    except (pltpu.LoweringException, TypeError, ValueError, NotImplementedError):
        # Tile budget already assumed double-buffered weights, so this is safe.
        out = call(None)

    # TODO(synk): for very large hidden/in_dim, add N/K grid axes (column-block
    # W2 with an h VMEM scratch under pl.when(j==0), K-split W1 with an f32
    # accumulator) to bound resident weight VMEM on v7x's 64 MiB.
    if B_p == B and hid_p == hidden:
        return out
    return out[:B, :hidden]


def init_params(key, in_dim, hidden_dim, dtype=jnp.float32):
    """Deterministic synthetic params (PyTorch-like uniform +-1/sqrt(fan_in))."""
    k1, k2, k3, k4 = jax.random.split(key, 4)
    bound1 = 1.0 / jnp.sqrt(in_dim)
    bound2 = 1.0 / jnp.sqrt(hidden_dim)
    w1 = jax.random.uniform(k1, (in_dim, hidden_dim), dtype, -bound1, bound1)
    b1 = jax.random.uniform(k2, (1, hidden_dim), dtype, -bound1, bound1)
    w2 = jax.random.uniform(k3, (hidden_dim, hidden_dim), dtype, -bound2, bound2)
    b2 = jax.random.uniform(k4, (1, hidden_dim), dtype, -bound2, bound2)
    return w1, b1, w2, b2


if __name__ == "__main__":
    key = jax.random.PRNGKey(0)
    kx, kp = jax.random.split(key)

    # Small demo shapes consistent with the module (AudioMLP(in_dim, hidden)).
    B, in_dim, hidden_dim = 8, 16, 32
    x = jax.random.normal(kx, (B, in_dim), jnp.float32)
    w1, b1, w2, b2 = init_params(kp, in_dim, hidden_dim)

    # Pad/cast the weights once (init-time), then run the kernel.
    params = prepare_params(w1, b1, w2, b2)
    out = audio_mlp(x, params)
    out = jax.block_until_ready(out)

    # Reference check in plain JAX (f32). bf16 MXU compute -> loosened tolerance.
    ref = jnp.maximum(x @ w1 + b1, 0.0) @ w2 + b2
    assert out.shape == (B, hidden_dim)
    assert out.dtype == x.dtype
    assert jnp.allclose(out, ref, atol=5e-2, rtol=5e-2), (
        "max abs err = %g" % float(jnp.max(jnp.abs(out - ref))))

    print("KERNEL_OK")
</pallas_src>

<mosaic_0001>
module attributes {stable_mosaic.version = 11 : i64} {
  func.func @audio_mlp_kernel(%arg0: i32, %arg1: memref<8x16xf32, #tpu.memory_space<vmem>>, %arg2: memref<16x128xbf16, #tpu.memory_space<vmem>>, %arg3: memref<1x128xf32, #tpu.memory_space<vmem>>, %arg4: memref<128x128xbf16, #tpu.memory_space<vmem>>, %arg5: memref<1x128xf32, #tpu.memory_space<vmem>>, %arg6: memref<8x128xf32, #tpu.memory_space<vmem>>) attributes {dimension_semantics = [#tpu.dimension_semantics<parallel>], iteration_bounds = array<i64: 1>, scalar_prefetch = 0 : i64, scratch_operands = 0 : i64, tpu.core_type = #tpu.core_type<tc>, window_params = [{transform_indices = @transform_0, window_bounds = array<i64: 8, 16>}, {pipeline_mode = #tpu.pipeline_mode<synchronous>, transform_indices = @transform_1, window_bounds = array<i64: 16, 128>}, {pipeline_mode = #tpu.pipeline_mode<synchronous>, transform_indices = @transform_2, window_bounds = array<i64: 1, 128>}, {pipeline_mode = #tpu.pipeline_mode<synchronous>, transform_indices = @transform_3, window_bounds = array<i64: 128, 128>}, {pipeline_mode = #tpu.pipeline_mode<synchronous>, transform_indices = @transform_4, window_bounds = array<i64: 1, 128>}, {transform_indices = @transform_5, window_bounds = array<i64: 8, 128>}]} {
    %c0 = arith.constant 0 : index
    %c0_0 = arith.constant 0 : index
    %0 = vector.load %arg1[%c0, %c0_0] : memref<8x16xf32, #tpu.memory_space<vmem>>, vector<8x16xf32>
    %1 = arith.truncf %0 : vector<8x16xf32> to vector<8x16xbf16>
    %c0_1 = arith.constant 0 : index
    %c0_2 = arith.constant 0 : index
    %2 = vector.load %arg2[%c0_1, %c0_2] : memref<16x128xbf16, #tpu.memory_space<vmem>>, vector<16x128xbf16>
    %cst = arith.constant dense<0.000000e+00> : vector<8x128xf32>
    %3 = tpu.matmul %1, %2, %cst {dimension_numbers = #tpu.dot_dimension_numbers<[1], [0], [0], [1], [0, 0, 1, 1], [], []>} : vector<8x16xbf16>, vector<16x128xbf16>, vector<8x128xf32> -> vector<8x128xf32>
    %c0_3 = arith.constant 0 : index
    %c0_4 = arith.constant 0 : index
    %4 = vector.load %arg3[%c0_3, %c0_4] : memref<1x128xf32, #tpu.memory_space<vmem>>, vector<1x128xf32>
    %5 = vector.broadcast %4 : vector<1x128xf32> to vector<8x128xf32>
    %6 = arith.addf %3, %5 : vector<8x128xf32>
    %cst_5 = arith.constant 0.000000e+00 : f32
    %7 = vector.broadcast %cst_5 : f32 to vector<8x128xf32>
    %8 = arith.maximumf %6, %7 : vector<8x128xf32>
    %9 = arith.truncf %8 : vector<8x128xf32> to vector<8x128xbf16>
    %c0_6 = arith.constant 0 : index
    %c0_7 = arith.constant 0 : index
    %10 = vector.load %arg4[%c0_6, %c0_7] : memref<128x128xbf16, #tpu.memory_space<vmem>>, vector<128x128xbf16>
    %cst_8 = arith.constant dense<0.000000e+00> : vector<8x128xf32>
    %11 = tpu.matmul %9, %10, %cst_8 {dimension_numbers = #tpu.dot_dimension_numbers<[1], [0], [0], [1], [0, 0, 1, 1], [], []>} : vector<8x128xbf16>, vector<128x128xbf16>, vector<8x128xf32> -> vector<8x128xf32>
    %c0_9 = arith.constant 0 : index
    %c0_10 = arith.constant 0 : index
    %12 = vector.load %arg5[%c0_9, %c0_10] : memref<1x128xf32, #tpu.memory_space<vmem>>, vector<1x128xf32>
    %13 = vector.broadcast %12 : vector<1x128xf32> to vector<8x128xf32>
    %14 = arith.addf %11, %13 : vector<8x128xf32>
    %c0_11 = arith.constant 0 : index
    %c0_12 = arith.constant 0 : index
    %15 = vector.load %arg6[%c0_11, %c0_12] : memref<8x128xf32, #tpu.memory_space<vmem>>, vector<8x128xf32>
    tpu.vector_store %arg6[%c0_11, %c0_12], %14 {strides = array<i32>} : memref<8x128xf32, #tpu.memory_space<vmem>>, vector<8x128xf32>,
    return
  }
  func.func @transform_0(%arg0: i32) -> (i32, i32) {
    %c0_i32 = arith.constant 0 : i32
    %c0_i32_0 = arith.constant 0 : i32
    return %arg0, %c0_i32 : i32, i32
  }
  func.func @transform_1(%arg0: i32) -> (i32, i32) {
    %c0_i32 = arith.constant 0 : i32
    %c0_i32_0 = arith.constant 0 : i32
    %c0_i32_1 = arith.constant 0 : i32
    return %c0_i32, %c0_i32_0 : i32, i32
  }
  func.func @transform_2(%arg0: i32) -> (i32, i32) {
    %c0_i32 = arith.constant 0 : i32
    %c0_i32_0 = arith.constant 0 : i32
    %c0_i32_1 = arith.constant 0 : i32
    return %c0_i32, %c0_i32_0 : i32, i32
  }
  func.func @transform_3(%arg0: i32) -> (i32, i32) {
    %c0_i32 = arith.constant 0 : i32
    %c0_i32_0 = arith.constant 0 : i32
    %c0_i32_1 = arith.constant 0 : i32
    return %c0_i32, %c0_i32_0 : i32, i32
  }
  func.func @transform_4(%arg0: i32) -> (i32, i32) {
    %c0_i32 = arith.constant 0 : i32
    %c0_i32_0 = arith.constant 0 : i32
    %c0_i32_1 = arith.constant 0 : i32
    return %c0_i32, %c0_i32_0 : i32, i32
  }
  func.func @transform_5(%arg0: i32) -> (i32, i32) {
    %c0_i32 = arith.constant 0 : i32
    %c0_i32_0 = arith.constant 0 : i32
    return %arg0, %c0_i32 : i32, i32
  }
}

</mosaic_0001>

<llo_original>
// kernel: tpu_custom_call.1
$region0: #{tpu_custom_call.1}
  #allocation0 [shape = 'u32[]', space=smem, size = 0x4, offset = 0x4, fixed_abs, tag = 'smem constant byte address 0x4 - core index']
  #allocation1 [shape = 'u32[72,128]{1,0:T(1,128)}', space=vmem, size = 0x9000, scoped, tag = 'internal scratch']
  %s0 = inlined_call_operand.hbm [shape: f32[8,16], index: 0, kind: input, shape index: {}]
  %s1 = inlined_call_operand.hbm [shape: bf16[16,128], index: 1, kind: input, shape index: {}]
  %s2 = inlined_call_operand.vmem [shape: f32[1,128], index: 2, kind: input, shape index: {}]
  %s3 = inlined_call_operand.hbm [shape: bf16[128,128], index: 3, kind: input, shape index: {}]
  %s4 = inlined_call_operand.vmem [shape: f32[1,128], index: 4, kind: input, shape index: {}]
  %s5 = inlined_call_operand.hbm [shape: f32[8,128], index: 5, kind: output, shape index: {}]
  %s6 = sld [smem:[#allocation0]]
  $region42: #{tpu_custom_call.1} parent=0
    _
  %s8 = ssub.s32 1, %s6
  %s9 = scalar_select 0, %s8, %s6
  $region1: #{tpu_custom_call.1} parent=0
    #allocation2 [shape = 'u8[4096]{0}', space=vmem, size = 0x1000, scoped, tag = 'input window, operand 0, single buffered']
    #allocation3 [shape = 's32[1]{0}', space=sflag, size = 0x4, scoped, tag = 'scoped memory for tpu_custom_call.1']
    #allocation4 [shape = 's32[1]{0}', space=sflag, size = 0x4, scoped, tag = 'scoped memory for tpu_custom_call.1']
    #allocation5 [shape = 'u8[4096]{0}', space=vmem, size = 0x1000, scoped, tag = 'input window, operand 1, single buffered']
    #allocation6 [shape = 's32[1]{0}', space=sflag, size = 0x4, scoped, tag = 'scoped memory for tpu_custom_call.1']
    #allocation7 [shape = 'u8[32768]{0}', space=vmem, size = 0x8000, scoped, tag = 'input window, operand 3, single buffered']
    #allocation8 [shape = 'u8[4096]{0}', space=vmem, size = 0x1000, scoped, tag = 'output window, operand 0, single buffered']
    %10 = vsyncpa [#allocation3], 0
    %11 = vsyncpa [#allocation6], 0
    %12 = vsyncpa [#allocation4], 0
    // Predicated region
    $region2: #{tpu_custom_call.1} parent=1 // pred_check
      _
    $region3: #{tpu_custom_call.1} parent=1 // pred_check_branch
      %14 = sbr.rel (0) target = $region5
    $region4: #{tpu_custom_call.1} parent=1 // pred_region
      %16 = vsyncadd [#allocation3], 0
      %s18 = sshll.u32 %s0, 4
      %s19 = int_to_ptr.hbm [resolvable:$true] %s18
      %s20 = sshll.u32 [#allocation2], 4
      %s21 = int_to_ptr.vmem [resolvable:$true] %s20
      %23 = dma.hbm_to_vmem [thread:$0]  %s19, 128, %s21, [#allocation3]
    $region5: #{tpu_custom_call.1} parent=1 // pred_fallthru
      _
    // Predicated region
    $region6: #{tpu_custom_call.1} parent=1 // pred_check
      _
    $region7: #{tpu_custom_call.1} parent=1 // pred_check_branch
      %25 = sbr.rel (0) target = $region9
    $region8: #{tpu_custom_call.1} parent=1 // pred_region
      %27 = vsyncadd [#allocation6], 0
      %s28 = sshll.u32 %s1, 4
      %s29 = int_to_ptr.hbm [resolvable:$true] %s28
      %s30 = sshll.u32 [#allocation5], 4
      %s31 = int_to_ptr.vmem [resolvable:$true] %s30
      %36 = dma.hbm_to_vmem [thread:$0]  %s29, 128, %s31, [#allocation6], 64, 64, 4
    $region9: #{tpu_custom_call.1} parent=1 // pred_fallthru
      _
    // Predicated region
    $region10: #{tpu_custom_call.1} parent=1 // pred_check
      _
    $region11: #{tpu_custom_call.1} parent=1 // pred_check_branch
      %38 = sbr.rel (0) target = $region13
    $region12: #{tpu_custom_call.1} parent=1 // pred_region
      _
    $region13: #{tpu_custom_call.1} parent=1 // pred_fallthru
      _
    // Predicated region
    $region14: #{tpu_custom_call.1} parent=1 // pred_check
      _
    $region15: #{tpu_custom_call.1} parent=1 // pred_check_branch
      %40 = sbr.rel (0) target = $region17
    $region16: #{tpu_custom_call.1} parent=1 // pred_region
      %42 = vsyncadd [#allocation6], 0
      %s43 = sshll.u32 %s3, 4
      %s44 = int_to_ptr.hbm [resolvable:$true] %s43
      %s45 = sshll.u32 [#allocation7], 4
      %s46 = int_to_ptr.vmem [resolvable:$true] %s45
      %51 = dma.hbm_to_vmem [thread:$0]  %s44, 1024, %s46, [#allocation6], 64, 64, 4
    $region17: #{tpu_custom_call.1} parent=1 // pred_fallthru
      _
    // Predicated region
    $region18: #{tpu_custom_call.1} parent=1 // pred_check
      _
    $region19: #{tpu_custom_call.1} parent=1 // pred_check_branch
      %53 = sbr.rel (0) target = $region21
    $region20: #{tpu_custom_call.1} parent=1 // pred_region
      _
    $region21: #{tpu_custom_call.1} parent=1 // pred_fallthru
      _
    // Predicated region
    $region22: #{tpu_custom_call.1} parent=1 // pred_check
      _
    $region23: #{tpu_custom_call.1} parent=1 // pred_check_branch
      %55 = sbr.rel (0) target = $region25
    $region24: #{tpu_custom_call.1} parent=1 // pred_region
      %57 = dma.done [#allocation3], 128
    $region25: #{tpu_custom_call.1} parent=1 // pred_fallthru
      _
    // Predicated region
    $region26: #{tpu_custom_call.1} parent=1 // pred_check
      _
    $region27: #{tpu_custom_call.1} parent=1 // pred_check_branch
      %59 = sbr.rel (0) target = $region29
    $region28: #{tpu_custom_call.1} parent=1 // pred_region
      %61 = dma.done [#allocation6], 128
    $region29: #{tpu_custom_call.1} parent=1 // pred_fallthru
      _
    // Predicated region
    $region30: #{tpu_custom_call.1} parent=1 // pred_check
      _
    $region31: #{tpu_custom_call.1} parent=1 // pred_check_branch
      %63 = sbr.rel (0) target = $region33
    $region32: #{tpu_custom_call.1} parent=1 // pred_region
      %65 = dma.done [#allocation6], 1024
    $region33: #{tpu_custom_call.1} parent=1 // pred_fallthru
      _
    %v67 = vld [vmem:[#allocation2] sm:$0xff]
    %v68 = vpack.c.bf16 %v67, %v67
    %v69 = vld [vmem:[#allocation5] sm:$0xf]
    %v70 = vld [vmem:[#allocation5 + $0x4] sm:$0xf]
    %v71 = vld [vmem:[%s2] sm:$0x1]
    %v73 = vperm.slane %v71, 0
    %v77 = vunpack.c.l.b16 %v69
    %v78 = vunpack.c.l.b16 %v70
    %v79 = vpack.c.b16 %v78, %v77
    %vm81 = vcmask 130048
    %v83 = vsel %vm81, %v68, 0
    %85 = vmatpush.bf16.msra.mxu0 0
    %86 = vmatpush.bf16.msra.mxu0 0
    %87 = vmatpush.bf16.msra.mxu0 0
    %88 = vmatpush.bf16.msra.mxu0 0
    %89 = vmatpush.bf16.msra.mxu0 0
    %90 = vmatpush.bf16.msra.mxu0 0
    %91 = vmatpush.bf16.msra.mxu0 0
    %92 = vmatpush.bf16.msra.mxu0 %v79
    %93 = vmatmul.bf16.gmra.mxu0 %v83
    %v94 = vpop.f32.mrf.mxu0
    %v95 = vadd.f32 %v73, %v94
    %v96 = vpop.f32.mrf.mxu0
    %97 = vdwg.mxu0
    %v98 = vmax.f32 %v95, 0.0
    %v99 = vpack.c.bf16 %v98, %v98
    %v100 = vld [vmem:[#allocation7] sm:$0xf]
    %v101 = vld [vmem:[#allocation7 + $0x4] sm:$0xf]
    %v102 = vld [vmem:[#allocation7 + $0x8] sm:$0xf]
    %v103 = vld [vmem:[#allocation7 + $0xc] sm:$0xf]
    %v104 = vld [vmem:[#allocation7 + $0x10] sm:$0xf]
    %v105 = vld [vmem:[#allocation7 + $0x14] sm:$0xf]
    %v106 = vld [vmem:[#allocation7 + $0x18] sm:$0xf]
    %v107 = vld [vmem:[#allocation7 + $0x1c] sm:$0xf]
    %v108 = vld [vmem:[#allocation7 + $0x20] sm:$0xf]
    %v109 = vld [vmem:[#allocation7 + $0x24] sm:$0xf]
    %v110 = vld [vmem:[#allocation7 + $0x28] sm:$0xf]
    %v111 = vld [vmem:[#allocation7 + $0x2c] sm:$0xf]
    %v112 = vld [vmem:[#allocation7 + $0x30] sm:$0xf]
    %v113 = vld [vmem:[#allocation7 + $0x34] sm:$0xf]
    %v114 = vld [vmem:[#allocation7 + $0x38] sm:$0xf]
    %v115 = vld [vmem:[#allocation7 + $0x3c] sm:$0xf]
    %v116 = vld [vmem:[%s4] sm:$0x1]
    %v118 = vperm.slane %v116, 0
    %v136 = vunpack.c.l.b16 %v100
    %v137 = vunpack.c.l.b16 %v101
    %v138 = vunpack.c.l.b16 %v102
    %v139 = vunpack.c.l.b16 %v103
    %v140 = vunpack.c.l.b16 %v104
    %v141 = vunpack.c.l.b16 %v105
    %v142 = vunpack.c.l.b16 %v106
    %v143 = vunpack.c.l.b16 %v107
    %v144 = vunpack.c.l.b16 %v108
    %v145 = vunpack.c.l.b16 %v109
    %v146 = vunpack.c.l.b16 %v110
    %v147 = vunpack.c.l.b16 %v111
    %v148 = vunpack.c.l.b16 %v112
    %v149 = vunpack.c.l.b16 %v113
    %v150 = vunpack.c.l.b16 %v114
    %v151 = vunpack.c.l.b16 %v115
    %v152 = vpack.c.b16 %v137, %v136
    %v153 = vpack.c.b16 %v139, %v138
    %v154 = vpack.c.b16 %v141, %v140
    %v155 = vpack.c.b16 %v143, %v142
    %v156 = vpack.c.b16 %v145, %v144
    %v157 = vpack.c.b16 %v147, %v146
    %v158 = vpack.c.b16 %v149, %v148
    %v159 = vpack.c.b16 %v151, %v150
    %168 = vmatpush.bf16.msra.mxu0 %v159
    %169 = vmatpush.bf16.msra.mxu0 %v158
    %170 = vmatpush.bf16.msra.mxu0 %v157
    %171 = vmatpush.bf16.msra.mxu0 %v156
    %172 = vmatpush.bf16.msra.mxu0 %v155
    %173 = vmatpush.bf16.msra.mxu0 %v154
    %174 = vmatpush.bf16.msra.mxu0 %v153
    %175 = vmatpush.bf16.msra.mxu0 %v152
    %176 = vmatmul.bf16.gmra.mxu0 %v99
    %v177 = vpop.f32.mrf.mxu0
    %v178 = vadd.f32 %v118, %v177
    %v179 = vpop.f32.mrf.mxu0
    %180 = vdwg.mxu0
    %181 = vst [vmem:[#allocation8] sm:$0xff] %v178
    // Predicated region
    $region34: #{tpu_custom_call.1} parent=1 // pred_check
      _
    $region35: #{tpu_custom_call.1} parent=1 // pred_check_branch
      %183 = sbr.rel (0) target = $region37
    $region36: #{tpu_custom_call.1} parent=1 // pred_region
      %185 = vsyncadd [#allocation4], 0
      %s187 = sshll.u32 [#allocation8], 4
      %s188 = int_to_ptr.vmem [resolvable:$true] %s187
      %s189 = sshll.u32 %s5, 4
      %s190 = int_to_ptr.hbm [resolvable:$true] %s189
      %192 = dma.vmem_to_hbm [thread:$0]  %s188, 128, %s190, [#allocation4]
    $region37: #{tpu_custom_call.1} parent=1 // pred_fallthru
      _
    // Predicated region
    $region38: #{tpu_custom_call.1} parent=1 // pred_check
      _
    $region39: #{tpu_custom_call.1} parent=1 // pred_check_branch
      %194 = sbr.rel (0) target = $region41
    $region40: #{tpu_custom_call.1} parent=1 // pred_region
      %196 = dma.done [#allocation4], 128
    $region41: #{tpu_custom_call.1} parent=1 // pred_fallthru
      _
    %197 = vsyncpa [#allocation3], 1
    %198 = vsyncpa [#allocation6], 1
    %199 = vsyncpa [#allocation4], 1

</llo_original>
